<compile_context>
chip_gen: v6e
topology: v6e:2x2x1
jax: 0.10.0
libtpu: 0.0.40
codegen_flags: <defaults>
</compile_context>

<pallas_src>
import jax
import jax.numpy as jnp
from jax.experimental import pallas as pl
from jax.experimental.pallas import tpu as pltpu


def _scale_kernel(x_ref, s_ref, o_ref):
    # x_ref: (TR, TC) VMEM tile; s_ref: (TR, 1) f32 per-row scale (lane bcast).
    x = x_ref[...]
    s = s_ref[...]
    o_ref[...] = (x.astype(jnp.float32) * s).astype(o_ref.dtype)


def _round_up(n, m):
    return ((n + m - 1) // m) * m


def scale_forward(x, scale, *, tile_byte_budget=4 * 1024 * 1024):
    """y = x * scale.

    x:     (B, C, H, W)  NCHW activation (f32 or bf16)
    scale: (1, C, 1, 1)  learnable parameter (kept in f32 for the multiply)
    """
    B, C, H, W = x.shape
    rows, cols = B * C, H * W
    dtype = x.dtype

    # Sublane alignment depends on dtype packing (8 for 32-bit, 16 for 16-bit).
    itemsize = jnp.dtype(dtype).itemsize
    row_align = {4: 8, 2: 16, 1: 32}.get(itemsize, 8)

    # Byte-budget tile sizing: lane axis first (wide, lane-dense, multiple of
    # 128), then sublane axis (multiple of row_align).
    elems_budget = max(tile_byte_budget // itemsize, row_align * 128)
    tc_cap = max(((elems_budget // row_align) // 128) * 128, 128)
    tc = min(_round_up(cols, 128), tc_cap)
    tr_cap = max(((elems_budget // tc) // row_align) * row_align, row_align)
    tr = min(_round_up(rows, row_align), tr_cap)

    # Glue (cheap, no HBM round trip for x): flatten to a lane-dense 2-D slab;
    # build the tiny per-row f32 scale column (one value per (batch, channel)).
    x2d = x.reshape(rows, cols)
    s_col = jnp.broadcast_to(
        scale.reshape(1, C).astype(jnp.float32), (B, C)
    ).reshape(rows, 1)

    grid = (pl.cdiv(rows, tr), pl.cdiv(cols, tc))

    out2d = pl.pallas_call(
        _scale_kernel,
        out_shape=jax.ShapeDtypeStruct((rows, cols), dtype),
        grid_spec=pl.GridSpec(
            grid=grid,
            in_specs=[
                pl.BlockSpec((tr, tc), lambda i, j: (i, j)),
                pl.BlockSpec((tr, 1), lambda i, j: (i, 0)),
            ],
            out_specs=pl.BlockSpec((tr, tc), lambda i, j: (i, j)),
        ),
        compiler_params=pltpu.CompilerParams(
            dimension_semantics=("parallel", "parallel"),
            vmem_limit_bytes=32 * 1024 * 1024,
        ),
    )(x2d, s_col)

    return out2d.reshape(B, C, H, W)


if __name__ == "__main__":
    init_value = 1e-5
    key = jax.random.PRNGKey(0)

    # Small shape consistent with the module (single full tile, no masking).
    B, C, H, W = 2, 4, 16, 16
    x = jax.random.normal(key, (B, C, H, W), dtype=jnp.float32)
    scale_param = jnp.full((1, C, 1, 1), init_value, dtype=jnp.float32)

    y = jax.block_until_ready(scale_forward(x, scale_param))
    ref = x * scale_param
    assert y.shape == x.shape and y.dtype == x.dtype
    assert jnp.allclose(y, ref, rtol=1e-6, atol=1e-6)

    # Second shape exercising the masked-edge-tile path (H*W not a multiple
    # of 128, B*C not a multiple of 8).
    B2, C2, H2, W2 = 3, 5, 12, 20
    x2 = jax.random.normal(jax.random.PRNGKey(1), (B2, C2, H2, W2),
                           dtype=jnp.float32)
    scale2 = jnp.full((1, C2, 1, 1), init_value, dtype=jnp.float32)
    y2 = jax.block_until_ready(scale_forward(x2, scale2))
    assert jnp.allclose(y2, x2 * scale2, rtol=1e-6, atol=1e-6)

    # bf16 activation path: multiply happens in f32 (scale stays f32), result
    # cast back to bf16.
    x3 = jax.random.normal(jax.random.PRNGKey(2), (2, 4, 16, 16),
                           dtype=jnp.bfloat16)
    scale3 = jnp.full((1, 4, 1, 1), init_value, dtype=jnp.float32)
    y3 = jax.block_until_ready(scale_forward(x3, scale3))
    ref3 = (x3.astype(jnp.float32) * scale3).astype(jnp.bfloat16)
    assert y3.dtype == jnp.bfloat16
    assert jnp.allclose(y3.astype(jnp.float32), ref3.astype(jnp.float32),
                        rtol=1e-2, atol=1e-7)

    print("KERNEL_OK")
</pallas_src>

<mosaic_0001>
module attributes {stable_mosaic.version = 11 : i64} {
  func.func @_scale_kernel(%arg0: i32, %arg1: i32, %arg2: memref<8x256xf32, #tpu.memory_space<vmem>>, %arg3: memref<8x1xf32, #tpu.memory_space<vmem>>, %arg4: memref<8x256xf32, #tpu.memory_space<vmem>>) attributes {dimension_semantics = [#tpu.dimension_semantics<parallel>, #tpu.dimension_semantics<parallel>], iteration_bounds = array<i64: 1, 1>, scalar_prefetch = 0 : i64, scratch_operands = 0 : i64, tpu.core_type = #tpu.core_type<tc>, window_params = [{transform_indices = @transform_0, window_bounds = array<i64: 8, 256>}, {transform_indices = @transform_1, window_bounds = array<i64: 8, 1>}, {transform_indices = @transform_2, window_bounds = array<i64: 8, 256>}]} {
    %c0 = arith.constant 0 : index
    %c0_0 = arith.constant 0 : index
    %0 = vector.load %arg2[%c0, %c0_0] : memref<8x256xf32, #tpu.memory_space<vmem>>, vector<8x256xf32>
    %c0_1 = arith.constant 0 : index
    %c0_2 = arith.constant 0 : index
    %1 = vector.load %arg3[%c0_1, %c0_2] : memref<8x1xf32, #tpu.memory_space<vmem>>, vector<8x1xf32>
    %2 = vector.broadcast %1 : vector<8x1xf32> to vector<8x256xf32>
    %3 = arith.mulf %0, %2 : vector<8x256xf32>
    %c0_3 = arith.constant 0 : index
    %c0_4 = arith.constant 0 : index
    %4 = vector.load %arg4[%c0_3, %c0_4] : memref<8x256xf32, #tpu.memory_space<vmem>>, vector<8x256xf32>
    tpu.vector_store %arg4[%c0_3, %c0_4], %3 {strides = array<i32>} : memref<8x256xf32, #tpu.memory_space<vmem>>, vector<8x256xf32>,
    return
  }
  func.func @transform_0(%arg0: i32, %arg1: i32) -> (i32, i32) {
    %c0_i32 = arith.constant 0 : i32
    return %arg0, %arg1 : i32, i32
  }
  func.func @transform_1(%arg0: i32, %arg1: i32) -> (i32, i32) {
    %c0_i32 = arith.constant 0 : i32
    %c0_i32_0 = arith.constant 0 : i32
    return %arg0, %c0_i32 : i32, i32
  }
  func.func @transform_2(%arg0: i32, %arg1: i32) -> (i32, i32) {
    %c0_i32 = arith.constant 0 : i32
    return %arg0, %arg1 : i32, i32
  }
}

</mosaic_0001>

<llo_original>
// kernel: tpu_custom_call.1
$region0: #{tpu_custom_call.1}
  #allocation0 [shape = 'u32[]', space=smem, size = 0x4, offset = 0x4, fixed_abs, tag = 'smem constant byte address 0x4 - core index']
  #allocation1 [shape = 'u32[144,128]{1,0:T(1,128)}', space=vmem, size = 0x12000, scoped, tag = 'internal scratch']
  %s0 = inlined_call_operand.hbm [shape: f32[8,256], index: 0, kind: input, shape index: {}]
  %s1 = inlined_call_operand.vmem [shape: f32[8,1], index: 1, kind: input, shape index: {}]
  %s2 = inlined_call_operand.hbm [shape: f32[8,256], index: 2, kind: output, shape index: {}]
  %s3 = sld [smem:[#allocation0]]
  $region22: #{tpu_custom_call.1} parent=0
    _
  %s5 = ssub.s32 1, %s3
  %s6 = scalar_select 0, %s5, %s3
  $region1: #{tpu_custom_call.1} parent=0
    #allocation2 [shape = 'u8[8192]{0}', space=vmem, size = 0x2000, scoped, tag = 'input window, operand 0, single buffered']
    #allocation3 [shape = 's32[1]{0}', space=sflag, size = 0x4, scoped, tag = 'scoped memory for tpu_custom_call.1']
    #allocation4 [shape = 's32[1]{0}', space=sflag, size = 0x4, scoped, tag = 'scoped memory for tpu_custom_call.1']
    #allocation5 [shape = 'u8[8192]{0}', space=vmem, size = 0x2000, scoped, tag = 'output window, operand 0, single buffered']
    %7 = vsyncpa [#allocation3], 0
    %8 = vsyncpa [#allocation4], 0
    // Predicated region
    $region2: #{tpu_custom_call.1} parent=1 // pred_check
      _
    $region3: #{tpu_custom_call.1} parent=1 // pred_check_branch
      %10 = sbr.rel (0) target = $region5
    $region4: #{tpu_custom_call.1} parent=1 // pred_region
      %s12 = ssub.s32 256, 256
      %13 = vsyncadd [#allocation3], %s12
      %s15 = sshll.u32 [#allocation2], 4
      %s16 = int_to_ptr.vmem [resolvable:$true] %s15
      %18 = dma.hbm_to_vmem [thread:$0]  %s0, 256, %s16, [#allocation3]
    $region5: #{tpu_custom_call.1} parent=1 // pred_fallthru
      _
    // Predicated region
    $region6: #{tpu_custom_call.1} parent=1 // pred_check
      _
    $region7: #{tpu_custom_call.1} parent=1 // pred_check_branch
      %20 = sbr.rel (0) target = $region9
    $region8: #{tpu_custom_call.1} parent=1 // pred_region
      _
    $region9: #{tpu_custom_call.1} parent=1 // pred_fallthru
      _
    // Predicated region
    $region10: #{tpu_custom_call.1} parent=1 // pred_check
      _
    $region11: #{tpu_custom_call.1} parent=1 // pred_check_branch
      %22 = sbr.rel (0) target = $region13
    $region12: #{tpu_custom_call.1} parent=1 // pred_region
      %23 = dma.done [#allocation3], 256
    $region13: #{tpu_custom_call.1} parent=1 // pred_fallthru
      _
    %v24 = vld [vmem:[#allocation2] sm:$0xff]
    %v25 = vld [vmem:[#allocation2 + $0x8] sm:$0xff]
    %v26 = vld [vmem:[%s1] sm:$0xff]
    %28 = vset.pattern.permute.xlu0 0
    %29 = vperm.xlu0 %28, %v26
    %v30 = vpop.permute.xlu0 %29
    %v32 = vmul.f32 %v24, %v30
    %v33 = vmul.f32 %v25, %v30
    %34 = vst [vmem:[#allocation5] sm:$0xff] %v32
    %35 = vst [vmem:[#allocation5 + $0x8] sm:$0xff] %v33
    // Predicated region
    $region14: #{tpu_custom_call.1} parent=1 // pred_check
      _
    $region15: #{tpu_custom_call.1} parent=1 // pred_check_branch
      %37 = sbr.rel (0) target = $region17
    $region16: #{tpu_custom_call.1} parent=1 // pred_region
      %s39 = ssub.s32 256, 256
      %40 = vsyncadd [#allocation4], %s39
      %s42 = sshll.u32 [#allocation5], 4
      %s43 = int_to_ptr.vmem [resolvable:$true] %s42
      %45 = dma.vmem_to_hbm [thread:$0]  %s43, 256, %s2, [#allocation4]
    $region17: #{tpu_custom_call.1} parent=1 // pred_fallthru
      _
    // Predicated region
    $region18: #{tpu_custom_call.1} parent=1 // pred_check
      _
    $region19: #{tpu_custom_call.1} parent=1 // pred_check_branch
      %47 = sbr.rel (0) target = $region21
    $region20: #{tpu_custom_call.1} parent=1 // pred_region
      %48 = dma.done [#allocation4], 256
    $region21: #{tpu_custom_call.1} parent=1 // pred_fallthru
      _
    %49 = vsyncpa [#allocation3], 1
    %50 = vsyncpa [#allocation4], 1

</llo_original>
